<compile_context>
chip_gen: v7x
topology: tpu7x:2x2x1
jax: 0.10.0
libtpu: 0.0.40
codegen_flags: <defaults>
</compile_context>

<pallas_src>
import functools

import jax
import jax.numpy as jnp
from jax import lax
from jax.experimental import pallas as pl
from jax.experimental.pallas import tpu as pltpu

NUM_STATE = 2          # MountainCar observation dim
HIDDEN = 128
LANE = 128             # TPU lane width
CHUNK = 128            # lane chunk processed per fused inner-loop step
DEFAULT_TILE_B = 8192  # batch rows per grid step (multiple of LANE)


def _cdiv(a, b):
    return -(-a // b)


def critic_kernel(x_ref, w1b_ref, b1b_ref, w2_ref, b2_ref, out_ref):
    """One batch tile, batch on the lane axis, fc1 + value head fused.

    x_ref  : [NUM_STATE, T]              transposed input tile
    w1b_ref: [NUM_STATE, HIDDEN, CHUNK]  lane-replicated fc1 weight columns
    b1b_ref: [HIDDEN, CHUNK]             lane-replicated fc1 bias
    w2_ref : [8, HIDDEN]                 sublane-replicated value-head weight row
    b2_ref : [1, 1] (SMEM)               value-head bias scalar
    out_ref: [1, T]                      value row
    """
    tile = out_ref.shape[1]
    n_chunks = tile // CHUNK
    b2 = b2_ref[0, 0]

    def chunk_body(c, carry):
        col = pl.multiple_of(c * CHUNK, CHUNK)
        # fc1: K = NUM_STATE = 2 is too shallow for the MXU -> rank-1 VPU MACs.
        h = w1b_ref[0] * x_ref[0:1, pl.ds(col, CHUNK)]
        for k in range(1, NUM_STATE):                     # unrolled (NUM_STATE = 2)
            h = h + w1b_ref[k] * x_ref[k:k + 1, pl.ds(col, CHUNK)]
        h = jnp.maximum(h + b1b_ref[...], 0.0)            # [HIDDEN, CHUNK]
        # Value head: 128-deep reduction on the otherwise-idle MXU.  LHS is the
        # sublane-replicated w2 row (aligned (8,128) operand); keep row 0.
        v = jnp.dot(w2_ref[...], h,
                    preferred_element_type=jnp.float32)[0:1, :]   # [1, CHUNK]
        # One lane-dense, lane-aligned vreg store per chunk (vst slot stays idle).
        out_ref[0:1, pl.ds(col, CHUNK)] = (v + b2).astype(out_ref.dtype)
        return carry

    # Largest divisor of n_chunks <= 8 -> safe partial unroll, no remainder.
    unroll = max(u for u in range(1, min(n_chunks, 8) + 1) if n_chunks % u == 0)
    lax.fori_loop(0, n_chunks, chunk_body, 0, unroll=unroll)


def prepare_critic_params(w1, b1, w2, b2):
    """One-time conversion of PyTorch nn.Linear params to kernel layout.

    w1: [HIDDEN, NUM_STATE], b1: [HIDDEN], w2: [1, HIDDEN], b2: [1].
    Call once per weight update, not per forward call (avoids re-broadcasting).
    """
    w1 = jnp.asarray(w1, jnp.float32)
    w1b = jnp.broadcast_to(w1.T[:, :, None], (NUM_STATE, HIDDEN, CHUNK))
    b1b = jnp.broadcast_to(jnp.asarray(b1, jnp.float32)[:, None], (HIDDEN, CHUNK))
    w2r = jnp.broadcast_to(jnp.asarray(w2, jnp.float32).reshape(1, HIDDEN),
                           (8, HIDDEN))
    b2s = jnp.asarray(b2, jnp.float32).reshape(1, 1)
    return w1b, b1b, w2r, b2s


@functools.partial(jax.jit, static_argnames=("tile_b", "bucket"))
def critic_forward_prepped(x, w1b, b1b, w2r, b2s, *,
                           tile_b=DEFAULT_TILE_B, bucket=False):
    """x: [B, NUM_STATE] f32; params from prepare_critic_params. Returns [B, 1]."""
    x = jnp.asarray(x, jnp.float32)
    B = x.shape[0]

    # ---- grid sizing: pad to 128-lane groups, split into an even number of
    #      equal tiles (balanced v7x megacore split), big tiles to amortize
    #      per-grid-step overhead.
    groups = _cdiv(B, LANE)
    if bucket:
        # Bucket the lane-group count to a power of two so varying RL batch
        # sizes hit a small set of compiled shapes (at most 2x padded work).
        groups = int(pl.next_power_of_2(groups))
    max_gpt = max(tile_b // LANE, 1)
    num_tiles = _cdiv(groups, max_gpt)
    if num_tiles == 1 and groups >= 2:
        num_tiles = 2                       # give both v7x TensorCores work
    elif num_tiles > 2 and num_tiles % 2:
        num_tiles += 1                      # even grid -> balanced 50/50 split
    gpt = _cdiv(groups, num_tiles)          # 128-lane groups per tile
    tile = gpt * LANE
    b_pad = tile * num_tiles

    # ---- batch on the lane axis; pad only the remainder (no full-size
    #      zeros().at[].set() round trip).  Padded columns compute finite
    #      garbage that is sliced off below.
    x_t = x.T                               # [NUM_STATE, B]
    if b_pad != B:
        x_t = jnp.pad(x_t, ((0, 0), (0, b_pad - B)))

    out_t = pl.pallas_call(
        critic_kernel,
        out_shape=jax.ShapeDtypeStruct((1, b_pad), jnp.float32),
        grid_spec=pltpu.PrefetchScalarGridSpec(
            num_scalar_prefetch=0,
            grid=(num_tiles,),
            in_specs=[
                pl.BlockSpec((NUM_STATE, tile), lambda i: (0, i)),              # x tile
                pl.BlockSpec((NUM_STATE, HIDDEN, CHUNK), lambda i: (0, 0, 0)),  # w1 (resident)
                pl.BlockSpec((HIDDEN, CHUNK), lambda i: (0, 0)),                # b1 (resident)
                pl.BlockSpec((8, HIDDEN), lambda i: (0, 0)),                    # w2 (resident)
                pl.BlockSpec(memory_space=pltpu.SMEM),                          # b2 scalar
            ],
            out_specs=pl.BlockSpec((1, tile), lambda i: (0, i)),
        ),
        compiler_params=pltpu.CompilerParams(
            # Batch axis is embarrassingly parallel: shards across v7x's 2 TCs;
            # harmless on single-TC v5e/v6e.
            dimension_semantics=("parallel",)),
    )(x_t, w1b, b1b, w2r, b2s)

    return out_t[0, :B].reshape(B, 1)


def critic_forward(x, w1, b1, w2, b2, *, tile_b=DEFAULT_TILE_B, bucket=False):
    """Convenience wrapper taking raw PyTorch-layout weights."""
    params = prepare_critic_params(w1, b1, w2, b2)
    return critic_forward_prepped(x, *params, tile_b=tile_b, bucket=bucket)


def init_params(key):
    """nn.Linear default init U(-1/sqrt(fan_in), 1/sqrt(fan_in)), PyTorch layout."""
    k1, k2, k3, k4 = jax.random.split(key, 4)
    bound1 = 1.0 / jnp.sqrt(jnp.float32(NUM_STATE))
    bound2 = 1.0 / jnp.sqrt(jnp.float32(HIDDEN))
    w1 = jax.random.uniform(k1, (HIDDEN, NUM_STATE), jnp.float32, -bound1, bound1)
    b1 = jax.random.uniform(k2, (HIDDEN,), jnp.float32, -bound1, bound1)
    w2 = jax.random.uniform(k3, (1, HIDDEN), jnp.float32, -bound2, bound2)
    b2 = jax.random.uniform(k4, (1,), jnp.float32, -bound2, bound2)
    return w1, b1, w2, b2


if __name__ == "__main__":
    key = jax.random.PRNGKey(0)
    k_params, k_x1, k_x2 = jax.random.split(key, 3)
    w1, b1, w2, b2 = init_params(k_params)

    def ref_forward(xx):
        h = jnp.maximum(
            jnp.dot(xx, w1.T, precision=lax.Precision.HIGHEST) + b1, 0.0)
        return jnp.dot(h, w2.T, precision=lax.Precision.HIGHEST) + b2

    # Prepare kernel-layout weights once (as a training loop would per update).
    params = prepare_critic_params(w1, b1, w2, b2)

    # Small per-step RL batch: single 128-lane tile, exercises lane padding.
    B = 8
    x = jax.random.normal(k_x1, (B, NUM_STATE), jnp.float32)
    value = jax.block_until_ready(critic_forward_prepped(x, *params))
    assert value.shape == (B, 1)
    assert jnp.allclose(value, ref_forward(x), atol=1e-4, rtol=1e-4)

    # PPO-update-sized batch: 17 lane groups -> padded to 18, two equal tiles
    # (balanced across v7x's TensorCores), fused chunk loop inside each tile.
    B2 = 2100
    x2 = jax.random.normal(k_x2, (B2, NUM_STATE), jnp.float32)
    value2 = jax.block_until_ready(critic_forward_prepped(x2, *params))
    assert value2.shape == (B2, 1)
    assert jnp.allclose(value2, ref_forward(x2), atol=1e-4, rtol=1e-4)

    print("KERNEL_OK")
</pallas_src>

<mosaic_0001>
module attributes {stable_mosaic.version = 11 : i64} {
  func.func @critic_kernel(%arg0: i32, %arg1: memref<2x128xf32, #tpu.memory_space<vmem>>, %arg2: memref<2x128x128xf32, #tpu.memory_space<vmem>>, %arg3: memref<128x128xf32, #tpu.memory_space<vmem>>, %arg4: memref<8x128xf32, #tpu.memory_space<vmem>>, %arg5: memref<1x1xf32, #tpu.memory_space<smem>>, %arg6: memref<1x128xf32, #tpu.memory_space<vmem>>) attributes {dimension_semantics = [#tpu.dimension_semantics<parallel>], iteration_bounds = array<i64: 1>, scalar_prefetch = 0 : i64, scratch_operands = 0 : i64, tpu.core_type = #tpu.core_type<tc>, window_params = [{transform_indices = @transform_0, window_bounds = array<i64: 2, 128>}, {pipeline_mode = #tpu.pipeline_mode<synchronous>, transform_indices = @transform_1, window_bounds = array<i64: 2, 128, 128>}, {pipeline_mode = #tpu.pipeline_mode<synchronous>, transform_indices = @transform_2, window_bounds = array<i64: 128, 128>}, {pipeline_mode = #tpu.pipeline_mode<synchronous>, transform_indices = @transform_3, window_bounds = array<i64: 8, 128>}, {transform_indices = @transform_4, window_bounds = array<i64: 1, 1>}, {transform_indices = @transform_5, window_bounds = array<i64: 1, 128>}]} {
    %c0 = arith.constant 0 : index
    %c0_0 = arith.constant 0 : index
    %0 = memref.load %arg5[%c0, %c0_0] : memref<1x1xf32, #tpu.memory_space<smem>>
    %c0_i32 = arith.constant 0 : i32
    %c128_i32 = arith.constant 128 : i32
    %1 = arith.muli %c0_i32, %c128_i32 : i32
    %2 = tpu.assume_multiple %1, 128 : i32
    %c0_1 = arith.constant 0 : index
    %c0_2 = arith.constant 0 : index
    %c0_3 = arith.constant 0 : index
    %3 = vector.load %arg2[%c0_1, %c0_2, %c0_3] : memref<2x128x128xf32, #tpu.memory_space<vmem>>, vector<1x128x128xf32>
    %4 = vector.shape_cast %3 : vector<1x128x128xf32> to vector<128x128xf32>
    %c0_4 = arith.constant 0 : index
    %5 = arith.index_cast %2 : i32 to index
    %6 = vector.load %arg1[%c0_4, %5] : memref<2x128xf32, #tpu.memory_space<vmem>>, vector<1x128xf32>
    %7 = vector.broadcast %6 : vector<1x128xf32> to vector<128x128xf32>
    %8 = arith.mulf %4, %7 : vector<128x128xf32>
    %c1 = arith.constant 1 : index
    %c0_5 = arith.constant 0 : index
    %c0_6 = arith.constant 0 : index
    %9 = vector.load %arg2[%c1, %c0_5, %c0_6] : memref<2x128x128xf32, #tpu.memory_space<vmem>>, vector<1x128x128xf32>
    %10 = vector.shape_cast %9 : vector<1x128x128xf32> to vector<128x128xf32>
    %c1_7 = arith.constant 1 : index
    %11 = arith.index_cast %2 : i32 to index
    %12 = vector.load %arg1[%c1_7, %11] : memref<2x128xf32, #tpu.memory_space<vmem>>, vector<1x128xf32>
    %13 = vector.broadcast %12 : vector<1x128xf32> to vector<128x128xf32>
    %14 = arith.mulf %10, %13 : vector<128x128xf32>
    %15 = arith.addf %8, %14 : vector<128x128xf32>
    %c0_8 = arith.constant 0 : index
    %c0_9 = arith.constant 0 : index
    %16 = vector.load %arg3[%c0_8, %c0_9] : memref<128x128xf32, #tpu.memory_space<vmem>>, vector<128x128xf32>
    %17 = arith.addf %15, %16 : vector<128x128xf32>
    %cst = arith.constant 0.000000e+00 : f32
    %18 = vector.broadcast %cst : f32 to vector<128x128xf32>
    %19 = arith.maximumf %17, %18 : vector<128x128xf32>
    %c0_10 = arith.constant 0 : index
    %c0_11 = arith.constant 0 : index
    %20 = vector.load %arg4[%c0_10, %c0_11] : memref<8x128xf32, #tpu.memory_space<vmem>>, vector<8x128xf32>
    %cst_12 = arith.constant dense<0.000000e+00> : vector<8x128xf32>
    %21 = tpu.matmul %20, %19, %cst_12 {dimension_numbers = #tpu.dot_dimension_numbers<[1], [0], [0], [1], [0, 0, 1, 1], [], []>} : vector<8x128xf32>, vector<128x128xf32>, vector<8x128xf32> -> vector<8x128xf32>
    %22 = vector.extract_strided_slice %21 {offsets = [0, 0], sizes = [1, 128], strides = [1, 1]} : vector<8x128xf32> to vector<1x128xf32>
    %23 = vector.broadcast %0 : f32 to vector<1x128xf32>
    %24 = arith.addf %22, %23 : vector<1x128xf32>
    %c0_13 = arith.constant 0 : index
    %25 = arith.index_cast %2 : i32 to index
    %26 = vector.load %arg6[%c0_13, %25] : memref<1x128xf32, #tpu.memory_space<vmem>>, vector<1x128xf32>
    tpu.vector_store %arg6[%c0_13, %25], %24 {strides = array<i32>} : memref<1x128xf32, #tpu.memory_space<vmem>>, vector<1x128xf32>,
    %c1_i32 = arith.constant 1 : i32
    return
  }
  func.func @transform_0(%arg0: i32) -> (i32, i32) {
    %c0_i32 = arith.constant 0 : i32
    %c0_i32_0 = arith.constant 0 : i32
    return %c0_i32, %arg0 : i32, i32
  }
  func.func @transform_1(%arg0: i32) -> (i32, i32, i32) {
    %c0_i32 = arith.constant 0 : i32
    %c0_i32_0 = arith.constant 0 : i32
    %c0_i32_1 = arith.constant 0 : i32
    %c0_i32_2 = arith.constant 0 : i32
    return %c0_i32, %c0_i32_0, %c0_i32_1 : i32, i32, i32
  }
  func.func @transform_2(%arg0: i32) -> (i32, i32) {
    %c0_i32 = arith.constant 0 : i32
    %c0_i32_0 = arith.constant 0 : i32
    %c0_i32_1 = arith.constant 0 : i32
    return %c0_i32, %c0_i32_0 : i32, i32
  }
  func.func @transform_3(%arg0: i32) -> (i32, i32) {
    %c0_i32 = arith.constant 0 : i32
    %c0_i32_0 = arith.constant 0 : i32
    %c0_i32_1 = arith.constant 0 : i32
    return %c0_i32, %c0_i32_0 : i32, i32
  }
  func.func @transform_4(%arg0: i32) -> (i32, i32) {
    %c0_i32 = arith.constant 0 : i32
    %c0_i32_0 = arith.constant 0 : i32
    %c0_i32_1 = arith.constant 0 : i32
    return %c0_i32, %c0_i32_0 : i32, i32
  }
  func.func @transform_5(%arg0: i32) -> (i32, i32) {
    %c0_i32 = arith.constant 0 : i32
    %c0_i32_0 = arith.constant 0 : i32
    return %c0_i32, %arg0 : i32, i32
  }
}

</mosaic_0001>

<llo_original>
// kernel: critic_forward_prepped.1
$region0: #{critic_forward_prepped.1}
  #allocation0 [shape = 'u32[]', space=smem, size = 0x4, offset = 0x4, fixed_abs, tag = 'smem constant byte address 0x4 - core index']
  #allocation1 [shape = 'u32[144,128]{1,0:T(1,128)}', space=vmem, size = 0x12000, scoped, tag = 'internal scratch']
  #allocation2 [shape = 'f32[1,1]{1,0:T(1,128)S(6)}', space=smem, size = 0x200, scoped, tag = 'scoped memory for critic_forward_prepped.1']
  %s0 = inlined_call_operand.vmem [shape: f32[2,128], index: 0, kind: input, shape index: {}]
  %s1 = inlined_call_operand.hbm [shape: f32[2,128,128], index: 1, kind: input, shape index: {}]
  %s2 = inlined_call_operand.hbm [shape: f32[128,128], index: 2, kind: input, shape index: {}]
  %s3 = inlined_call_operand.vmem [shape: f32[8,128], index: 3, kind: input, shape index: {}]
  %s4 = inlined_call_operand.<no memory space> [shape: f32[1,1], index: 4, kind: input, shape index: {}]
  %s5 = inlined_call_operand.vmem [shape: f32[1,128], index: 5, kind: output, shape index: {}]
  %s6 = sld [smem:[#allocation0]]
  $region38: #{critic_forward_prepped.1} parent=0
    _
  %s8 = ssub.s32 1, %s6
  %s9 = scalar_select 0, %s8, %s6
  %10 = sst [smem:[#allocation2]] %s4
  $region1: #{critic_forward_prepped.1} parent=0
    #allocation3 [shape = 'u8[131072]{0}', space=vmem, size = 0x20000, scoped, tag = 'input window, operand 1, single buffered']
    #allocation4 [shape = 's32[1]{0}', space=sflag, size = 0x4, scoped, tag = 'scoped memory for critic_forward_prepped.1']
    #allocation5 [shape = 'u8[65536]{0}', space=vmem, size = 0x10000, scoped, tag = 'input window, operand 2, single buffered']
    #allocation6 [shape = 's32[1]{0}', space=sflag, size = 0x4, scoped, tag = 'scoped memory for critic_forward_prepped.1']
    %11 = vsyncpa [#allocation4], 0
    %12 = vsyncpa [#allocation6], 0
    // Predicated region
    $region2: #{critic_forward_prepped.1} parent=1 // pred_check
      _
    $region3: #{critic_forward_prepped.1} parent=1 // pred_check_branch
      %14 = sbr.rel (0) target = $region5
    $region4: #{critic_forward_prepped.1} parent=1 // pred_region
      _
    $region5: #{critic_forward_prepped.1} parent=1 // pred_fallthru
      _
    // Predicated region
    $region6: #{critic_forward_prepped.1} parent=1 // pred_check
      _
    $region7: #{critic_forward_prepped.1} parent=1 // pred_check_branch
      %16 = sbr.rel (0) target = $region9
    $region8: #{critic_forward_prepped.1} parent=1 // pred_region
      %s18 = ssub.s32 4096, 4096
      %19 = vsyncadd [#allocation4], %s18
      %s20 = sshll.u32 [#allocation3], 4
      %s21 = int_to_ptr.vmem [resolvable:$true] %s20
      %26 = dma.hbm_to_vmem [thread:$0]  %s1, 4096, %s21, [#allocation4], 128, 128, 8
    $region9: #{critic_forward_prepped.1} parent=1 // pred_fallthru
      _
    // Predicated region
    $region10: #{critic_forward_prepped.1} parent=1 // pred_check
      _
    $region11: #{critic_forward_prepped.1} parent=1 // pred_check_branch
      %28 = sbr.rel (0) target = $region13
    $region12: #{critic_forward_prepped.1} parent=1 // pred_region
      %s30 = ssub.s32 2048, 2048
      %31 = vsyncadd [#allocation6], %s30
      %s32 = sshll.u32 [#allocation5], 4
      %s33 = int_to_ptr.vmem [resolvable:$true] %s32
      %38 = dma.hbm_to_vmem [thread:$0]  %s2, 2048, %s33, [#allocation6], 128, 128, 8
    $region13: #{critic_forward_prepped.1} parent=1 // pred_fallthru
      _
    // Predicated region
    $region14: #{critic_forward_prepped.1} parent=1 // pred_check
      _
    $region15: #{critic_forward_prepped.1} parent=1 // pred_check_branch
      %40 = sbr.rel (0) target = $region17
    $region16: #{critic_forward_prepped.1} parent=1 // pred_region
      _
    $region17: #{critic_forward_prepped.1} parent=1 // pred_fallthru
      _
    // Predicated region
    $region18: #{critic_forward_prepped.1} parent=1 // pred_check
      _
    $region19: #{critic_forward_prepped.1} parent=1 // pred_check_branch
      %42 = sbr.rel (0) target = $region21
    $region20: #{critic_forward_prepped.1} parent=1 // pred_region
      _
    $region21: #{critic_forward_prepped.1} parent=1 // pred_fallthru
      _
    // Predicated region
    $region22: #{critic_forward_prepped.1} parent=1 // pred_check
      _
    $region23: #{critic_forward_prepped.1} parent=1 // pred_check_branch
      %44 = sbr.rel (0) target = $region25
    $region24: #{critic_forward_prepped.1} parent=1 // pred_region
      %45 = dma.done [#allocation4], 4096
    $region25: #{critic_forward_prepped.1} parent=1 // pred_fallthru
      _
    // Predicated region
    $region26: #{critic_forward_prepped.1} parent=1 // pred_check
      _
    $region27: #{critic_forward_prepped.1} parent=1 // pred_check_branch
      %47 = sbr.rel (0) target = $region29
    $region28: #{critic_forward_prepped.1} parent=1 // pred_region
      %48 = dma.done [#allocation6], 2048
    $region29: #{critic_forward_prepped.1} parent=1 // pred_fallthru
      _
    %s49 = sld [smem:[#allocation2]]
    %v50 = vld [vmem:[#allocation3] sm:$0xff]
    %v51 = vld [vmem:[#allocation3 + $0x8] sm:$0xff]
    %v52 = vld [vmem:[#allocation3 + $0x10] sm:$0xff]
    %v53 = vld [vmem:[#allocation3 + $0x18] sm:$0xff]
    %v54 = vld [vmem:[#allocation3 + $0x20] sm:$0xff]
    %v55 = vld [vmem:[#allocation3 + $0x28] sm:$0xff]
    %v56 = vld [vmem:[#allocation3 + $0x30] sm:$0xff]
    %v57 = vld [vmem:[#allocation3 + $0x38] sm:$0xff]
    %v58 = vld [vmem:[#allocation3 + $0x40] sm:$0xff]
    %v59 = vld [vmem:[#allocation3 + $0x48] sm:$0xff]
    %v60 = vld [vmem:[#allocation3 + $0x50] sm:$0xff]
    %v61 = vld [vmem:[#allocation3 + $0x58] sm:$0xff]
    %v62 = vld [vmem:[#allocation3 + $0x60] sm:$0xff]
    %v63 = vld [vmem:[#allocation3 + $0x68] sm:$0xff]
    %v64 = vld [vmem:[#allocation3 + $0x70] sm:$0xff]
    %v65 = vld [vmem:[#allocation3 + $0x78] sm:$0xff]
    %v66 = vld [vmem:[%s0] sm:$0x1]
    %v67 = vlaneseq
    %v68 = vshrl.u32 %v67, 7
    %v69 = vsub.s32 0, %v68
    %v70 = vrot.slane %v66, %v69
    %v71 = vmul.f32 %v50, %v70
    %v72 = vmul.f32 %v51, %v70
    %v73 = vmul.f32 %v52, %v70
    %v74 = vmul.f32 %v53, %v70
    %v75 = vmul.f32 %v54, %v70
    %v76 = vmul.f32 %v55, %v70
    %v77 = vmul.f32 %v56, %v70
    %v78 = vmul.f32 %v57, %v70
    %v79 = vmul.f32 %v58, %v70
    %v80 = vmul.f32 %v59, %v70
    %v81 = vmul.f32 %v60, %v70
    %v82 = vmul.f32 %v61, %v70
    %v83 = vmul.f32 %v62, %v70
    %v84 = vmul.f32 %v63, %v70
    %v85 = vmul.f32 %v64, %v70
    %v86 = vmul.f32 %v65, %v70
    %s87 = scalar_lea.vmem [#allocation3], 128
    %v88 = vld [vmem:[%s87] sm:$0xff]
    %v89 = vld [vmem:[%s87 + $0x8] sm:$0xff]
    %v90 = vld [vmem:[%s87 + $0x10] sm:$0xff]
    %v91 = vld [vmem:[%s87 + $0x18] sm:$0xff]
    %v92 = vld [vmem:[%s87 + $0x20] sm:$0xff]
    %v93 = vld [vmem:[%s87 + $0x28] sm:$0xff]
    %v94 = vld [vmem:[%s87 + $0x30] sm:$0xff]
    %v95 = vld [vmem:[%s87 + $0x38] sm:$0xff]
    %v96 = vld [vmem:[%s87 + $0x40] sm:$0xff]
    %v97 = vld [vmem:[%s87 + $0x48] sm:$0xff]
    %v98 = vld [vmem:[%s87 + $0x50] sm:$0xff]
    %v99 = vld [vmem:[%s87 + $0x58] sm:$0xff]
    %v100 = vld [vmem:[%s87 + $0x60] sm:$0xff]
    %v101 = vld [vmem:[%s87 + $0x68] sm:$0xff]
    %v102 = vld [vmem:[%s87 + $0x70] sm:$0xff]
    %v103 = vld [vmem:[%s87 + $0x78] sm:$0xff]
    %v104 = vld [vmem:[%s0 + $0x1] sm:$0x1]
    %v105 = vlaneseq
    %v106 = vshrl.u32 %v105, 7
    %v107 = vsub.s32 0, %v106
    %v108 = vrot.slane %v104, %v107
    %v109 = vmul.f32 %v88, %v108
    %v110 = vmul.f32 %v89, %v108
    %v111 = vmul.f32 %v90, %v108
    %v112 = vmul.f32 %v91, %v108
    %v113 = vmul.f32 %v92, %v108
    %v114 = vmul.f32 %v93, %v108
    %v115 = vmul.f32 %v94, %v108
    %v116 = vmul.f32 %v95, %v108
    %v117 = vmul.f32 %v96, %v108
    %v118 = vmul.f32 %v97, %v108
    %v119 = vmul.f32 %v98, %v108
    %v120 = vmul.f32 %v99, %v108
    %v121 = vmul.f32 %v100, %v108
    %v122 = vmul.f32 %v101, %v108
    %v123 = vmul.f32 %v102, %v108
    %v124 = vmul.f32 %v103, %v108
    %v125 = vadd.f32 %v71, %v109
    %v126 = vadd.f32 %v72, %v110
    %v127 = vadd.f32 %v73, %v111
    %v128 = vadd.f32 %v74, %v112
    %v129 = vadd.f32 %v75, %v113
    %v130 = vadd.f32 %v76, %v114
    %v131 = vadd.f32 %v77, %v115
    %v132 = vadd.f32 %v78, %v116
    %v133 = vadd.f32 %v79, %v117
    %v134 = vadd.f32 %v80, %v118
    %v135 = vadd.f32 %v81, %v119
    %v136 = vadd.f32 %v82, %v120
    %v137 = vadd.f32 %v83, %v121
    %v138 = vadd.f32 %v84, %v122
    %v139 = vadd.f32 %v85, %v123
    %v140 = vadd.f32 %v86, %v124
    %v141 = vld [vmem:[#allocation5] sm:$0xff]
    %v142 = vld [vmem:[#allocation5 + $0x8] sm:$0xff]
    %v143 = vld [vmem:[#allocation5 + $0x10] sm:$0xff]
    %v144 = vld [vmem:[#allocation5 + $0x18] sm:$0xff]
    %v145 = vld [vmem:[#allocation5 + $0x20] sm:$0xff]
    %v146 = vld [vmem:[#allocation5 + $0x28] sm:$0xff]
    %v147 = vld [vmem:[#allocation5 + $0x30] sm:$0xff]
    %v148 = vld [vmem:[#allocation5 + $0x38] sm:$0xff]
    %v149 = vld [vmem:[#allocation5 + $0x40] sm:$0xff]
    %v150 = vld [vmem:[#allocation5 + $0x48] sm:$0xff]
    %v151 = vld [vmem:[#allocation5 + $0x50] sm:$0xff]
    %v152 = vld [vmem:[#allocation5 + $0x58] sm:$0xff]
    %v153 = vld [vmem:[#allocation5 + $0x60] sm:$0xff]
    %v154 = vld [vmem:[#allocation5 + $0x68] sm:$0xff]
    %v155 = vld [vmem:[#allocation5 + $0x70] sm:$0xff]
    %v156 = vld [vmem:[#allocation5 + $0x78] sm:$0xff]
    %v157 = vadd.f32 %v125, %v141
    %v158 = vadd.f32 %v126, %v142
    %v159 = vadd.f32 %v127, %v143
    %v160 = vadd.f32 %v128, %v144
    %v161 = vadd.f32 %v129, %v145
    %v162 = vadd.f32 %v130, %v146
    %v163 = vadd.f32 %v131, %v147
    %v164 = vadd.f32 %v132, %v148
    %v165 = vadd.f32 %v133, %v149
    %v166 = vadd.f32 %v134, %v150
    %v167 = vadd.f32 %v135, %v151
    %v168 = vadd.f32 %v136, %v152
    %v169 = vadd.f32 %v137, %v153
    %v170 = vadd.f32 %v138, %v154
    %v171 = vadd.f32 %v139, %v155
    %v172 = vadd.f32 %v140, %v156
    %v173 = vmax.f32 %v157, 0.0
    %v174 = vmax.f32 %v158, 0.0
    %v175 = vmax.f32 %v159, 0.0
    %v176 = vmax.f32 %v160, 0.0
    %v177 = vmax.f32 %v161, 0.0
    %v178 = vmax.f32 %v162, 0.0
    %v179 = vmax.f32 %v163, 0.0
    %v180 = vmax.f32 %v164, 0.0
    %v181 = vmax.f32 %v165, 0.0
    %v182 = vmax.f32 %v166, 0.0
    %v183 = vmax.f32 %v167, 0.0
    %v184 = vmax.f32 %v168, 0.0
    %v185 = vmax.f32 %v169, 0.0
    %v186 = vmax.f32 %v170, 0.0
    %v187 = vmax.f32 %v171, 0.0
    %v188 = vmax.f32 %v172, 0.0
    %v189 = vld [vmem:[%s3] sm:$0xff]
    %190 = vmatprep.subr.mxu0 0.0
    %191 = vmatpush1.msra.mxu0 %v173
    %192 = vmatprep.subr.mxu0 0.0
    %193 = vmatpush1.msra.mxu0 %v174
    %194 = vmatprep.subr.mxu0 0.0
    %195 = vmatpush1.msra.mxu0 %v175
    %196 = vmatprep.subr.mxu0 0.0
    %197 = vmatpush1.msra.mxu0 %v176
    %198 = vmatprep.subr.mxu0 0.0
    %199 = vmatpush1.msra.mxu0 %v177
    %200 = vmatprep.subr.mxu0 0.0
    %201 = vmatpush1.msra.mxu0 %v178
    %202 = vmatprep.subr.mxu0 0.0
    %203 = vmatpush1.msra.mxu0 %v179
    %204 = vmatprep.subr.mxu0 0.0
    %205 = vmatpush1.msra.mxu0 %v180
    %206 = vmatprep.subr.mxu0 0.0
    %207 = vmatpush1.msra.mxu0 %v181
    %208 = vmatprep.subr.mxu0 0.0
    %209 = vmatpush1.msra.mxu0 %v182
    %210 = vmatprep.subr.mxu0 0.0
    %211 = vmatpush1.msra.mxu0 %v183
    %212 = vmatprep.subr.mxu0 0.0
    %213 = vmatpush1.msra.mxu0 %v184
    %214 = vmatprep.subr.mxu0 0.0
    %215 = vmatpush1.msra.mxu0 %v185
    %216 = vmatprep.subr.mxu0 0.0
    %217 = vmatpush1.msra.mxu0 %v186
    %218 = vmatprep.subr.mxu0 0.0
    %219 = vmatpush1.msra.mxu0 %v187
    %220 = vmatprep.subr.mxu0 0.0
    %221 = vmatpush1.msra.mxu0 %v188
    %222 = vmatprep.subr.mxu0 0.0
    %223 = vmatpush1.msra.mxu0 0.0
    %224 = vmatprep.subr.mxu0 0.0
    %225 = vmatpush1.msra.mxu0 0.0
    %226 = vmatprep.subr.mxu0 0.0
    %227 = vmatpush1.msra.mxu0 0.0
    %228 = vmatprep.subr.mxu0 0.0
    %229 = vmatpush1.msra.mxu0 0.0
    %230 = vmatprep.subr.mxu0 0.0
    %231 = vmatpush1.msra.mxu0 0.0
    %232 = vmatprep.subr.mxu0 0.0
    %233 = vmatpush1.msra.mxu0 0.0
    %234 = vmatprep.subr.mxu0 0.0
    %235 = vmatpush1.msra.mxu0 0.0
    %236 = vmatprep.subr.mxu0 0.0
    %237 = vmatpush1.msra.mxu0 0.0
    %238 = vmatprep.subr.mxu0 0.0
    %239 = vmatpush1.msra.mxu0 0.0
    %240 = vmatprep.subr.mxu0 0.0
    %241 = vmatpush1.msra.mxu0 0.0
    %242 = vmatprep.subr.mxu0 0.0
    %243 = vmatpush1.msra.mxu0 0.0
    %244 = vmatprep.subr.mxu0 0.0
    %245 = vmatpush1.msra.mxu0 0.0
    %246 = vmatprep.subr.mxu0 0.0
    %247 = vmatpush1.msra.mxu0 0.0
    %248 = vmatprep.subr.mxu0 0.0
    %249 = vmatpush1.msra.mxu0 0.0
    %250 = vmatprep.subr.mxu0 0.0
    %251 = vmatpush1.msra.mxu0 0.0
    %252 = vmatprep.subr.mxu0 0.0
    %253 = vmatpush1.msra.mxu0 0.0
    %254 = vmatprep.mubr.f32.mxu0 0.0
    %255 = vmatmul.mubr.f32.gmra.mrb[0].mxu0 %v189
    %v256 = vpop.f32.mrb[0].mxu0
    %v257 = vadd.f32 0.0, %v256
    %v258 = vpop.f32.mrb[0].mxu0
    %259 = vdwg.mxu0
    %v260 = vstv %s49
    %v261 = vadd.f32 %v257, %v260
    %262 = vst [vmem:[%s5] sm:$0x1] %v261
    // Predicated region
    $region30: #{critic_forward_prepped.1} parent=1 // pred_check
      _
    $region31: #{critic_forward_prepped.1} parent=1 // pred_check_branch
      %264 = sbr.rel (0) target = $region33
    $region32: #{critic_forward_prepped.1} parent=1 // pred_region
      _
    $region33: #{critic_forward_prepped.1} parent=1 // pred_fallthru
      _
    // Predicated region
    $region34: #{critic_forward_prepped.1} parent=1 // pred_check
      _
    $region35: #{critic_forward_prepped.1} parent=1 // pred_check_branch
      %266 = sbr.rel (0) target = $region37
    $region36: #{critic_forward_prepped.1} parent=1 // pred_region
      _
    $region37: #{critic_forward_prepped.1} parent=1 // pred_fallthru
      _
    %267 = vsyncpa [#allocation4], 1
    %268 = vsyncpa [#allocation6], 1

</llo_original>
